<compile_context>
chip_gen: v7x
topology: tpu7x:2x2x1
jax: 0.10.0
libtpu: 0.0.40
codegen_flags: <defaults>
</compile_context>

<pallas_src>
import functools

import jax
import jax.numpy as jnp
from jax import lax
from jax.experimental import pallas as pl
from jax.experimental.pallas import tpu as pltpu


def _tv_tile_kernel(x_ref, o_ref, *, H, W):
    """One (c_tile, H*W) tile -> one f32 partial TV sum (splat to (8,128))."""
    x = x_ref[...]                                        # (c_tile, L), input dtype
    lane = lax.broadcasted_iota(jnp.int32, x.shape, x.ndim - 1)

    total = jnp.float32(0.0)

    if W > 1:
        # Horizontal neighbour: roll by +1 puts x[i-1] at lane i (jnp.roll
        # semantics).  Valid pairs are lanes with (i % W) != 0, which excludes
        # spatial-row starts and the single circular wrap at i == 0.
        xw = pltpu.roll(x, shift=1, axis=x.ndim - 1)
        dw = jnp.where(lane % W != 0, jnp.abs(xw - x), 0).astype(jnp.float32)
        total = total + jnp.sum(dw)

    if H > 1:
        # Vertical neighbour: roll by +W puts x[i-W] at lane i.  Valid pairs
        # are lanes with i >= W (excludes the first spatial row / the wrap).
        xh = pltpu.roll(x, shift=W, axis=x.ndim - 1)
        dh = jnp.where(lane >= W, jnp.abs(xh - x), 0).astype(jnp.float32)
        total = total + jnp.sum(dh)

    # Aligned (8,128) output tile -> unmasked store; consumer reads [0,0].
    o_ref[...] = jnp.full((8, 128), total, dtype=jnp.float32)


def _choose_c_tile(C, bytes_per_channel, target_bytes=4 * 1024 * 1024):
    """Largest legal channel tile whose block stays under ~target_bytes."""
    if C * bytes_per_channel <= target_bytes:
        return C
    # When c_tile != C, the second-to-last block dim must be a multiple of 8.
    for d in range(C, 0, -1):
        if C % d == 0 and d % 8 == 0 and d * bytes_per_channel <= target_bytes:
            return d
    return C  # fall back to whole-channel block (VMEM limit raised below)


def tv_loss(x: jax.Array) -> jax.Array:
    """Total-variation loss, matching TVLoss.forward on an NCHW tensor."""
    N, C, H, W = x.shape
    L = H * W
    itemsize = jnp.dtype(x.dtype).itemsize

    c_tile = _choose_c_tile(C, L * itemsize)
    grid_c = C // c_tile

    block_bytes = c_tile * L * itemsize
    cp_kwargs = dict(dimension_semantics=("parallel", "parallel"))
    if 2 * block_bytes > 24 * 1024 * 1024:  # double-buffered input block
        cp_kwargs["vmem_limit_bytes"] = min(2 * block_bytes + (8 << 20), 112 << 20)

    # Wrapper-side reshape: lane-dense last dim (H*W), no in-kernel relayout.
    x2 = x.reshape(N, C, L)

    kernel = functools.partial(_tv_tile_kernel, H=H, W=W)

    out = pl.pallas_call(
        kernel,
        out_shape=jax.ShapeDtypeStruct((N, grid_c, 8, 128), jnp.float32),
        grid_spec=pltpu.PrefetchScalarGridSpec(
            num_scalar_prefetch=0,
            grid=(N, grid_c),
            in_specs=[
                pl.BlockSpec((None, c_tile, L), lambda n, c: (n, c, 0)),
            ],
            out_specs=pl.BlockSpec((None, None, 8, 128), lambda n, c: (n, c, 0, 0)),
        ),
        compiler_params=pltpu.CompilerParams(**cp_kwargs),
        cost_estimate=pl.CostEstimate(
            flops=4 * N * C * H * W,
            transcendentals=0,
            bytes_accessed=N * C * H * W * itemsize + N * grid_c * 8 * 128 * 4,
        ),
    )(x2)

    partials = out[:, :, 0, 0]                 # (N, grid_c) per-tile partial sums
    # mean over batch of per-sample TV, divided by (C*H*W)
    return jnp.sum(partials) * (1.0 / (N * C * H * W))


def _tv_loss_ref(x: jax.Array) -> jax.Array:
    """Pure-JAX reference for correctness checking."""
    N, C, H, W = x.shape
    xf = x.astype(jnp.float32)
    dh = jnp.sum(jnp.abs(xf[:, :, 1:, :] - xf[:, :, :-1, :]), axis=(1, 2, 3))
    dw = jnp.sum(jnp.abs(xf[:, :, :, 1:] - xf[:, :, :, :-1]), axis=(1, 2, 3))
    return jnp.mean(dh + dw) / (C * H * W)


if __name__ == "__main__":
    key = jax.random.PRNGKey(0)

    # Primary test shape (matches the module's NCHW expectation).
    x = jax.random.normal(key, (2, 4, 16, 16), dtype=jnp.float32)
    out = tv_loss(x)
    jax.block_until_ready(out)
    ref = _tv_loss_ref(x)
    assert jnp.allclose(out, ref, rtol=1e-5, atol=1e-5), (out, ref)

    # Secondary small shape (different C/H/W, lane dim exactly 128).
    key2 = jax.random.PRNGKey(1)
    x2 = jax.random.normal(key2, (2, 8, 8, 16), dtype=jnp.float32)
    out2 = tv_loss(x2)
    jax.block_until_ready(out2)
    ref2 = _tv_loss_ref(x2)
    assert jnp.allclose(out2, ref2, rtol=1e-5, atol=1e-5), (out2, ref2)

    print("KERNEL_OK")
</pallas_src>

<mosaic_0001>
module attributes {stable_mosaic.version = 11 : i64} {
  func.func @_tv_tile_kernel(%arg0: i32, %arg1: i32, %arg2: memref<1x4x256xf32, #tpu.memory_space<vmem>>, %arg3: memref<1x1x8x128xf32, #tpu.memory_space<vmem>>) attributes {dimension_semantics = [#tpu.dimension_semantics<parallel>, #tpu.dimension_semantics<parallel>], iteration_bounds = array<i64: 2, 1>, scalar_prefetch = 0 : i64, scratch_operands = 0 : i64, tpu.core_type = #tpu.core_type<tc>, window_params = [{transform_indices = @transform_0, window_bounds = array<i64: 1, 4, 256>}, {transform_indices = @transform_1, window_bounds = array<i64: 1, 1, 8, 128>}]} {
    %c0 = arith.constant 0 : index
    %c0_0 = arith.constant 0 : index
    %c0_1 = arith.constant 0 : index
    %0 = vector.load %arg2[%c0, %c0_0, %c0_1] : memref<1x4x256xf32, #tpu.memory_space<vmem>>, vector<1x4x256xf32>
    %1 = vector.shape_cast %0 : vector<1x4x256xf32> to vector<4x256xf32>
    %2 = tpu.iota {dimensions = array<i32: 1>} : vector<4x256xi32>
    %c1_i32 = arith.constant 1 : i32
    %3 = tpu.dynamic_rotate %1 by %c1_i32 dim 1 : vector<4x256xf32>, i32 -> vector<4x256xf32>
    %c16_i32 = arith.constant 16 : i32
    %c0_i32 = arith.constant 0 : i32
    %4 = arith.cmpi eq, %c16_i32, %c0_i32 : i32
    %c1_i32_2 = arith.constant 1 : i32
    %5 = arith.select %4, %c1_i32_2, %c16_i32 : i32
    %6 = vector.broadcast %5 : i32 to vector<4x256xi32>
    %7 = arith.remsi %2, %6 : vector<4x256xi32>
    %c0_i32_3 = arith.constant 0 : i32
    %8 = vector.broadcast %c0_i32_3 : i32 to vector<4x256xi32>
    %9 = arith.cmpi ne, %7, %8 : vector<4x256xi32>
    %c0_i32_4 = arith.constant 0 : i32
    %10 = vector.broadcast %c0_i32_4 : i32 to vector<4x256xi32>
    %11 = arith.cmpi slt, %7, %10 : vector<4x256xi32>
    %c0_i32_5 = arith.constant 0 : i32
    %12 = arith.cmpi slt, %5, %c0_i32_5 : i32
    %13 = vector.broadcast %12 : i1 to vector<4x256xi1>
    %14 = vector.broadcast %13 : vector<4x256xi1> to vector<4x256xi1>
    %15 = arith.xori %11, %14 : vector<4x256xi1>
    %16 = arith.andi %15, %9 : vector<4x256xi1>
    %17 = vector.broadcast %5 : i32 to vector<4x256xi32>
    %18 = arith.addi %7, %17 : vector<4x256xi32>
    %19 = arith.select %16, %18, %7 : vector<4x256xi1>, vector<4x256xi32>
    %c0_i32_6 = arith.constant 0 : i32
    %20 = vector.broadcast %c0_i32_6 : i32 to vector<4x256xi32>
    %21 = arith.cmpi ne, %19, %20 : vector<4x256xi32>
    %22 = arith.subf %3, %1 : vector<4x256xf32>
    %23 = math.absf %22 : vector<4x256xf32>
    %c0_i32_7 = arith.constant 0 : i32
    %24 = arith.sitofp %c0_i32_7 : i32 to f32
    %25 = vector.broadcast %24 : f32 to vector<4x256xf32>
    %26 = arith.select %21, %23, %25 : vector<4x256xi1>, vector<4x256xf32>
    %27 = vector.shape_cast %26 : vector<4x256xf32> to vector<1x4x256xf32>
    %cst = arith.constant dense<0.000000e+00> : vector<1xf32>
    %28 = vector.multi_reduction <add>, %27, %cst [1, 2] : vector<1x4x256xf32> to vector<1xf32>
    %29 = vector.shape_cast %28 : vector<1xf32> to vector<1x1x1xf32>
    %30 = vector.extract %29[0, 0, 0] : f32 from vector<1x1x1xf32>
    %cst_8 = arith.constant 0.000000e+00 : f32
    %31 = arith.addf %cst_8, %30 : f32
    %c16_i32_9 = arith.constant 16 : i32
    %32 = tpu.dynamic_rotate %1 by %c16_i32_9 dim 1 : vector<4x256xf32>, i32 -> vector<4x256xf32>
    %c16_i32_10 = arith.constant 16 : i32
    %33 = vector.broadcast %c16_i32_10 : i32 to vector<4x256xi32>
    %34 = arith.cmpi sge, %2, %33 : vector<4x256xi32>
    %35 = arith.subf %32, %1 : vector<4x256xf32>
    %36 = math.absf %35 : vector<4x256xf32>
    %c0_i32_11 = arith.constant 0 : i32
    %37 = arith.sitofp %c0_i32_11 : i32 to f32
    %38 = vector.broadcast %37 : f32 to vector<4x256xf32>
    %39 = arith.select %34, %36, %38 : vector<4x256xi1>, vector<4x256xf32>
    %40 = vector.shape_cast %39 : vector<4x256xf32> to vector<1x4x256xf32>
    %cst_12 = arith.constant dense<0.000000e+00> : vector<1xf32>
    %41 = vector.multi_reduction <add>, %40, %cst_12 [1, 2] : vector<1x4x256xf32> to vector<1xf32>
    %42 = vector.shape_cast %41 : vector<1xf32> to vector<1x1x1xf32>
    %43 = vector.extract %42[0, 0, 0] : f32 from vector<1x1x1xf32>
    %44 = arith.addf %31, %43 : f32
    %45 = vector.broadcast %44 : f32 to vector<8x128xf32>
    %c0_13 = arith.constant 0 : index
    %c0_14 = arith.constant 0 : index
    %c0_15 = arith.constant 0 : index
    %c0_16 = arith.constant 0 : index
    %46 = vector.load %arg3[%c0_13, %c0_14, %c0_15, %c0_16] : memref<1x1x8x128xf32, #tpu.memory_space<vmem>>, vector<1x1x8x128xf32>
    %47 = vector.shape_cast %46 : vector<1x1x8x128xf32> to vector<8x128xf32>
    %48 = vector.shape_cast %45 : vector<8x128xf32> to vector<1x1x8x128xf32>
    tpu.vector_store %arg3[%c0_13, %c0_14, %c0_15, %c0_16], %48 {strides = array<i32>} : memref<1x1x8x128xf32, #tpu.memory_space<vmem>>, vector<1x1x8x128xf32>,
    return
  }
  func.func @transform_0(%arg0: i32, %arg1: i32) -> (i32, i32, i32) {
    %c0_i32 = arith.constant 0 : i32
    %c0_i32_0 = arith.constant 0 : i32
    return %arg0, %arg1, %c0_i32 : i32, i32, i32
  }
  func.func @transform_1(%arg0: i32, %arg1: i32) -> (i32, i32, i32, i32) {
    %c0_i32 = arith.constant 0 : i32
    %c0_i32_0 = arith.constant 0 : i32
    %c0_i32_1 = arith.constant 0 : i32
    return %arg0, %arg1, %c0_i32, %c0_i32_0 : i32, i32, i32, i32
  }
}

</mosaic_0001>

<llo_original>
// kernel: tpu_custom_call.1
$region0: #{tpu_custom_call.1}
  #allocation0 [shape = 'u32[]', space=smem, size = 0x4, offset = 0x4, fixed_abs, tag = 'smem constant byte address 0x4 - core index']
  #allocation1 [shape = 'u32[144,128]{1,0:T(1,128)}', space=vmem, size = 0x12000, scoped, tag = 'internal scratch']
  %s0 = inlined_call_operand.hbm [shape: f32[2,4,256], index: 0, kind: input, shape index: {}]
  %s1 = inlined_call_operand.hbm [shape: f32[2,1,8,128], index: 1, kind: output, shape index: {}]
  %s2 = sld [smem:[#allocation0]]
  $region41: #{tpu_custom_call.1} parent=0
    _
  %s4 = ssub.s32 1, %s2
  %s5 = scalar_select 0, %s4, %s2
  $region1: #{tpu_custom_call.1} parent=0
    #allocation2 [shape = 'u8[8192]{0}', space=vmem, size = 0x2000, scoped, tag = 'input window, operand 0']
    #allocation3 [shape = 's32[2]{0}', space=sflag, size = 0x8, scoped, tag = 'scoped memory for tpu_custom_call.1']
    #allocation4 [shape = 's32[2]{0}', space=sflag, size = 0x8, scoped, tag = 'scoped memory for tpu_custom_call.1']
    #allocation5 [shape = 'u8[8192]{0}', space=vmem, size = 0x2000, scoped, tag = 'output window, operand 0']
    %6 = vsyncpa [#allocation3], 0
    %s7 = scalar_lea.sflag [#allocation3], 1
    %8 = vsyncpa %s7, 0
    %9 = vsyncpa [#allocation4], 0
    %s10 = scalar_lea.sflag [#allocation4], 1
    %11 = vsyncpa %s10, 0
    loop: start=0, step=1, limit=4
    $region2: #{tpu_custom_call.1} parent=1 // loop_pre_header
      _
    $region3: #{tpu_custom_call.1} parent=1 // loop_header
      %s13 = sphi 0, %s17
      %p14 = scmp.ge.s32.totalorder %s13, 4
      %s20 = sphi 0, %s32
      %s21 = sphi 0, %s28
      %s22 = sphi 0, %s20
      %s23 = sphi 0, %s21
      %s24 = sphi 0, %s22
      %s25 = sphi 0, %s23
      %s37 = sphi 0, %s39
      %s40 = sphi 0, %s37
      %s41 = sphi 0, %s40
      %s57 = sphi 0, %s41
      %s65 = sphi 0, %s67
      %s68 = sphi 0, %s65
      %s69 = sphi 0, %s68
      %s85 = sphi 0, %s69
    $region4: #{tpu_custom_call.1} parent=1 // loop_header_branch
      %16 = sbr.rel (%p14) target = $region8
    $region5: #{tpu_custom_call.1} parent=1 // loop_body
      %s18 = ssub.s32 %s13, 1
      %s19 = ssub.s32 %s13, 2
      %s26 = sadd.s32 1, %s21
      %p27 = scmp.ge.s32.totalorder %s26, 1
      %s28 = scalar_select %p27, 0, %s26
      %s29 = sadd.s32 1, %s20
      %s30 = scalar_select %p27, %s29, %s20
      %p31 = scmp.ge.s32.totalorder %s30, 2
      %s32 = scalar_select %p31, 0, %s30
      %s33 = ssub.s32 %s20, %s32
      %s34 = ssub.s32 %s21, %s28
      %s35 = sor.u32 %s33, %s34
      %p36 = scmp.eq.s32.totalorder %s35, 0
      %s38 = sadd.s32 %s37, 1
      %s39 = scalar_select %p36, %s37, %s38
      %p42 = pneg %p36
      %p43 = scmp.eq.s32.totalorder %s13, 1
      %p44 = por %p42, %p43
      %p45 = scmp.ne.s32.totalorder %s37, %s40
      %p46 = scmp.eq.s32.totalorder %s13, 0
      %p47 = por %p45, %p46
      %p48 = scmp.ne.s32.totalorder %s37, %s40
      %p49 = scmp.eq.s32.totalorder %s18, 1
      %p50 = por %p48, %p49
      %p51 = scmp.ne.s32.totalorder %s40, %s41
      %p52 = scmp.eq.s32.totalorder %s18, 0
      %p53 = por %p51, %p52
      %p54 = scmp.ne.s32.totalorder %s40, %s41
      %p55 = scmp.eq.s32.totalorder %s19, 1
      %p56 = por %p54, %p55
      %p58 = scmp.ne.s32.totalorder %s41, %s57
      %p59 = scmp.eq.s32.totalorder %s19, 0
      %p60 = por %p58, %p59
      %s61 = ssub.s32 %s20, %s32
      %s62 = ssub.s32 %s21, %s28
      %s63 = sor.u32 %s61, %s62
      %p64 = scmp.eq.s32.totalorder %s63, 0
      %s66 = sadd.s32 %s65, 1
      %s67 = scalar_select %p64, %s65, %s66
      %p70 = pneg %p64
      %p71 = scmp.eq.s32.totalorder %s13, 1
      %p72 = por %p70, %p71
      %p73 = scmp.ne.s32.totalorder %s65, %s68
      %p74 = scmp.eq.s32.totalorder %s13, 0
      %p75 = por %p73, %p74
      %p76 = scmp.ne.s32.totalorder %s65, %s68
      %p77 = scmp.eq.s32.totalorder %s18, 1
      %p78 = por %p76, %p77
      %p79 = scmp.ne.s32.totalorder %s68, %s69
      %p80 = scmp.eq.s32.totalorder %s18, 0
      %p81 = por %p79, %p80
      %p82 = scmp.ne.s32.totalorder %s68, %s69
      %p83 = scmp.eq.s32.totalorder %s19, 1
      %p84 = por %p82, %p83
      %p86 = scmp.ne.s32.totalorder %s69, %s85
      %p87 = scmp.eq.s32.totalorder %s19, 0
      %p88 = por %p86, %p87
      %p89 = scmp.le.s32.totalorder 1, %s13
      %p90 = scmp.lt.s32.totalorder %s13, 3
      %p91 = pnand %p89, %p90
      %p92 = pneg %p91
      // Predicated region
      $region9: #{tpu_custom_call.1} parent=5 // pred_check
        _
      $region10: #{tpu_custom_call.1} parent=5 // pred_check_branch
        %94 = sbr.rel (%p91) target = $region12
      $region11: #{tpu_custom_call.1} parent=5 // pred_region
        %s95 = ssub.s32 %s13, 1
      $region12: #{tpu_custom_call.1} parent=5 // pred_fallthru
        _
      %p96 = scmp.lt.s32.totalorder %s13, 2
      // Predicated region
      $region13: #{tpu_custom_call.1} parent=5 // pred_check
        %p97 = pneg %p96
      $region14: #{tpu_custom_call.1} parent=5 // pred_check_branch
        %99 = sbr.rel (%p97) target = $region16
      $region15: #{tpu_custom_call.1} parent=5 // pred_region
        // Predicated region
        $region17: #{tpu_custom_call.1} parent=15 // pred_check
          %p100 = pneg %p47
        $region18: #{tpu_custom_call.1} parent=15 // pred_check_branch
          %102 = sbr.rel (%p100) target = $region20
        $region19: #{tpu_custom_call.1} parent=15 // pred_region
          %s103 = sand.u32 %s37, 1
          %s104 = scalar_lea.sflag [#allocation3], %s103
          %s105 = sand.u32 %s37, 1
          %s106 = smul.addr %s105, 8
          %s107 = scalar_lea.vmem [#allocation2], %s106
          %s109 = ssub.s32 128, 128
          %110 = vsyncadd %s104, %s109
          %s111 = smul.addr %s21, 2
          %s112 = smul.addr %s20, 2
          %s113 = sadd.s32 %s111, %s112
          %s114 = smul.addr %s113, 64
          %s115 = scalar_lea.hbm %s0, %s114
          %s117 = sshll.u32 %s107, 4
          %s118 = int_to_ptr.vmem [resolvable:$true] %s117
          %120 = dma.hbm_to_vmem [thread:$0]  %s115, 128, %s118, %s104
        $region20: #{tpu_custom_call.1} parent=15 // pred_fallthru
          _
      $region16: #{tpu_custom_call.1} parent=5 // pred_fallthru
        _
      %p121 = scmp.le.s32.totalorder 1, %s13
      %p122 = scmp.lt.s32.totalorder %s13, 3
      %p123 = pnand %p121, %p122
      %p124 = pneg %p123
      // Predicated region
      $region21: #{tpu_custom_call.1} parent=5 // pred_check
        _
      $region22: #{tpu_custom_call.1} parent=5 // pred_check_branch
        %126 = sbr.rel (%p123) target = $region24
      $region23: #{tpu_custom_call.1} parent=5 // pred_region
        %s127 = ssub.s32 %s13, 1
        %s128 = sand.u32 %s40, 1
        %s129 = scalar_lea.sflag [#allocation3], %s128
        %s130 = sand.u32 %s40, 1
        %s131 = smul.addr %s130, 8
        %s132 = scalar_lea.vmem [#allocation2], %s131
        // Predicated region
        $region25: #{tpu_custom_call.1} parent=23 // pred_check
          %p133 = pneg %p53
        $region26: #{tpu_custom_call.1} parent=23 // pred_check_branch
          %135 = sbr.rel (%p133) target = $region28
        $region27: #{tpu_custom_call.1} parent=23 // pred_region
          %136 = dma.done %s129, 128
        $region28: #{tpu_custom_call.1} parent=23 // pred_fallthru
          _
        %s137 = sand.u32 %s40, 1
        %s138 = scalar_lea.sflag [#allocation3], %s137
        %s139 = sand.u32 %s40, 1
        %s140 = smul.addr %s139, 8
        %s141 = scalar_lea.vmem [#allocation2], %s140
        %p142 = pneg %p53
        %p143 = pneg %p50
        %p144 = pneg %p81
        %p145 = pneg %p78
        %s146 = sand.u32 %s68, 1
        %s147 = scalar_lea.sflag [#allocation4], %s146
        %s148 = sand.u32 %s68, 1
        %s149 = smul.addr %s148, 8
        %s150 = scalar_lea.vmem [#allocation5], %s149
        %v151 = vld [vmem:[%s132] sm:$0xff]
        %v152 = vlaneseq
        %v153 = vand.u32 %v152, 127
        %v154 = vadd.s32 %v153, 128
        %v156 = vcombine.high %v151, %v151
        %158 = vrot.lane.b32.xlu0 %v151, 1
        %v159 = vpop.permute.xlu0 %158
        %160 = vrot.lane.b32.xlu0 %v156, 1
        %v161 = vpop.permute.xlu0 %160
        %vm162 = vcmp.lt.s32.totalorder %v153, 1
        %v163 = vsel %vm162, %v159, %v161
        %v164 = vsel %vm162, %v161, %v159
        %vm165 = vcmp.lt.s32.totalorder %v153, 0
        %v166 = vsub.s32 0, %v153
        %v167 = vsel %vm165, %v166, %v153
        %v168 = vshrl.u32 %v167, 4
        %v169 = vand.u32 %v167, 15
        %v170 = vsub.s32 0, %v169
        %v171 = vsel %vm165, %v170, %v169
        %vm172 = vcmp.lt.s32.totalorder %v154, 0
        %v173 = vsub.s32 0, %v154
        %v174 = vsel %vm172, %v173, %v154
        %v175 = vshrl.u32 %v174, 4
        %v176 = vand.u32 %v174, 15
        %v177 = vsub.s32 0, %v176
        %v178 = vsel %vm172, %v177, %v176
        %vm179 = vcmp.ne.s32.totalorder %v171, 0
        %vm180 = vcmp.ne.s32.totalorder %v178, 0
        %vm181 = vcmp.lt.s32.totalorder %v171, 0
        %vm182 = vcmp.lt.s32.totalorder %v178, 0
        %vm183 = vmand %vm181, %vm179
        %vm184 = vmand %vm182, %vm180
        %v185 = vadd.s32 %v171, 16
        %v186 = vadd.s32 %v178, 16
        %v187 = vsel %vm183, %v185, %v171
        %v188 = vsel %vm184, %v186, %v178
        %vm189 = vcmp.ne.s32.totalorder %v187, 0
        %vm190 = vcmp.ne.s32.totalorder %v188, 0
        %v191 = vsub.f32 %v164, %v151
        %v192 = vsub.f32 %v163, %v156
        %v193 = vand.u32 2147483647, %v191
        %v194 = vand.u32 2147483647, %v192
        %v195 = vsel %vm189, %v193, 0.0
        %v196 = vsel %vm190, %v194, 0.0
        %vm197 = vcmask 1043456
        %v198 = vsel %vm197, %v195, 0.0
        %v199 = vsel %vm197, %v196, 0.0
        %v200 = vadd.f32 %v198, %v199
        %201 = vadd.xlane.f32.xlu0 %v200
        %v202 = vpop.xlane.xlu0 %201
        %v203 = vrot.slane %v202, 4
        %v204 = vadd.f32 %v202, %v203
        %v205 = vrot.slane %v204, 2
        %v206 = vadd.f32 %v204, %v205
        %v207 = vrot.slane %v206, 1
        %v208 = vadd.f32 %v206, %v207
        %s209 = vtos %v208
        %s210 = sadd.f32 %s209, 0.0
        %211 = vrot.lane.b32.xlu0 %v151, 16
        %v212 = vpop.permute.xlu0 %211
        %213 = vrot.lane.b32.xlu0 %v156, 16
        %v214 = vpop.permute.xlu0 %213
        %vm215 = vcmp.lt.s32.totalorder %v153, 16
        %v216 = vsel %vm215, %v212, %v214
        %v217 = vsel %vm215, %v214, %v212
        %vm218 = vcmp.ge.s32.totalorder %v153, 16
        %vm219 = vcmp.ge.s32.totalorder %v154, 16
        %v220 = vsub.f32 %v217, %v151
        %v221 = vsub.f32 %v216, %v156
        %v222 = vand.u32 2147483647, %v220
        %v223 = vand.u32 2147483647, %v221
        %v224 = vsel %vm218, %v222, 0.0
        %v225 = vsel %vm219, %v223, 0.0
        %v226 = vsel %vm197, %v224, 0.0
        %v227 = vsel %vm197, %v225, 0.0
        %v228 = vadd.f32 %v226, %v227
        %229 = vadd.xlane.f32.xlu0 %v228
        %v230 = vpop.xlane.xlu0 %229
        %v231 = vrot.slane %v230, 4
        %v232 = vadd.f32 %v230, %v231
        %v233 = vrot.slane %v232, 2
        %v234 = vadd.f32 %v232, %v233
        %v235 = vrot.slane %v234, 1
        %v236 = vadd.f32 %v234, %v235
        %s237 = vtos %v236
        %s238 = sadd.f32 %s210, %s237
        %v239 = vstv %s238
        %240 = vst [vmem:[%s150] sm:$0xff] %v239
        %s241 = sand.u32 %s68, 1
        %s242 = scalar_lea.sflag [#allocation4], %s241
        %s243 = sand.u32 %s68, 1
        %s244 = smul.addr %s243, 8
        %s245 = scalar_lea.vmem [#allocation5], %s244
        // Predicated region
        $region29: #{tpu_custom_call.1} parent=23 // pred_check
          %p246 = pneg %p78
        $region30: #{tpu_custom_call.1} parent=23 // pred_check_branch
          %248 = sbr.rel (%p246) target = $region32
        $region31: #{tpu_custom_call.1} parent=23 // pred_region
          %s250 = ssub.s32 128, 128
          %251 = vsyncadd %s242, %s250
          %s252 = sadd.s32 %s23, %s22
          %s253 = smul.addr %s252, 128
          %s254 = scalar_lea.hbm %s1, %s253
          %s256 = sshll.u32 %s245, 4
          %s257 = int_to_ptr.vmem [resolvable:$true] %s256
          %259 = dma.vmem_to_hbm [thread:$0]  %s257, 128, %s254, %s242
        $region32: #{tpu_custom_call.1} parent=23 // pred_fallthru
          _
      $region24: #{tpu_custom_call.1} parent=5 // pred_fallthru
        _
      %p260 = scmp.le.s32.totalorder 2, %s13
      // Predicated region
      $region33: #{tpu_custom_call.1} parent=5 // pred_check
        %p261 = pneg %p260
      $region34: #{tpu_custom_call.1} parent=5 // pred_check_branch
        %263 = sbr.rel (%p261) target = $region36
      $region35: #{tpu_custom_call.1} parent=5 // pred_region
        %s264 = ssub.s32 %s13, 2
        // Predicated region
        $region37: #{tpu_custom_call.1} parent=35 // pred_check
          %p265 = pneg %p84
        $region38: #{tpu_custom_call.1} parent=35 // pred_check_branch
          %267 = sbr.rel (%p265) target = $region40
        $region39: #{tpu_custom_call.1} parent=35 // pred_region
          %s268 = sand.u32 %s69, 1
          %s269 = scalar_lea.sflag [#allocation4], %s268
          %s270 = sand.u32 %s69, 1
          %s271 = smul.addr %s270, 8
          %s272 = scalar_lea.vmem [#allocation5], %s271
          %273 = dma.done %s269, 128
        $region40: #{tpu_custom_call.1} parent=35 // pred_fallthru
          _
      $region36: #{tpu_custom_call.1} parent=5 // pred_fallthru
        _
    $region6: #{tpu_custom_call.1} parent=1 // loop_footer
      %s17 = sadd.s32 1, %s13
    $region7: #{tpu_custom_call.1} parent=1 // loop_footer_branch
      %12 = sbr.rel target = $region3
    $region8: #{tpu_custom_call.1} parent=1 // loop_exit
      _
    %274 = vsyncpa [#allocation3], 1
    %s275 = scalar_lea.sflag [#allocation3], 1
    %276 = vsyncpa %s275, 1
    %277 = vsyncpa [#allocation4], 1
    %s278 = scalar_lea.sflag [#allocation4], 1
    %279 = vsyncpa %s278, 1

</llo_original>
